<compile_context>
chip_gen: v7x
topology: tpu7x:2x2x1
jax: 0.10.0
libtpu: 0.0.40
codegen_flags: <defaults>
</compile_context>

<pallas_src>
import functools
import math

import jax
import jax.numpy as jnp
from jax.experimental import pallas as pl
from jax.experimental.pallas import tpu as pltpu

HIDDEN = 256
LANE = 128                       # TPU lane width (last-dim alignment)
VMEM_BUDGET = 12 * 1024 * 1024   # double-buffered working-set budget (v5e-safe)


def _round_up(x, m):
    return ((x + m - 1) // m) * m


def _has_bf16_eup():
    """True on chips with a bf16 EUP/VPU path (v6e / v7x); False on v5e & older."""
    try:
        kind = jax.devices()[0].device_kind.lower()
    except Exception:  # pragma: no cover - CPU/interpret fallback
        return False
    return any(tag in kind for tag in ("v6", "v7", "trillium"))


def _fused_mlp_kernel(x_ref, w1_ref, b1_ref, w2_ref, b2_ref, wh_ref, bh_ref,
                      out_ref, *, bf16_tanh):
    """Two tanh FC layers + fused (logits|value) head, all on the MXU.

    x arrives as f32 and is cast to bf16 in-kernel (so HBM only carries the
    f32 obs once).  Matmuls are bf16 x bf16 -> f32 accumulation.  tanh runs in
    bf16 when the chip has a bf16 EUP (v6e/v7x), f32 otherwise (v5e).
    Output tile is [tb, n_pad] with n_pad a multiple of 128 -> lane-dense,
    unmasked stores.
    """
    x = x_ref[...].astype(jnp.bfloat16)                               # [tb, D]
    a1 = (jnp.dot(x, w1_ref[...], preferred_element_type=jnp.float32)
          + b1_ref[...])                                              # f32 [tb, 256]
    if bf16_tanh:
        h1 = jnp.tanh(a1.astype(jnp.bfloat16))                        # bf16 EUP
    else:
        h1 = jnp.tanh(a1).astype(jnp.bfloat16)                        # f32 EUP (v5e)
    a2 = (jnp.dot(h1, w2_ref[...], preferred_element_type=jnp.float32)
          + b2_ref[...])                                              # f32 [tb, 256]
    if bf16_tanh:
        h2 = jnp.tanh(a2.astype(jnp.bfloat16))
    else:
        h2 = jnp.tanh(a2).astype(jnp.bfloat16)
    out_ref[...] = (jnp.dot(h2, wh_ref[...],
                            preferred_element_type=jnp.float32)
                    + bh_ref[...])                                    # f32 [tb, n_pad]


def _choose_batch_tile(B, D, n_pad):
    """Pick (tb, b_rows): batch tile and the row count handed to pallas_call.

    Big tiles for HBM efficiency / per-step overhead, bounded by the VMEM
    budget, by a <=12.5% masked-rows limit on the last partial tile, and by a
    >=2-grid-steps preference (v7x megacore) when the batch allows it.
    Tiny batches (B <= 16) are padded to a single 16-row tile.
    """
    weight_bytes = 2 * ((D * HIDDEN + HIDDEN * HIDDEN + HIDDEN * n_pad) * 2
                        + (2 * HIDDEN + n_pad) * 4)        # double-buffered

    def vmem_ok(tb):
        io = 2 * (tb * D * 4 + tb * n_pad * 4)             # x + out, double-buffered
        return weight_bytes + io <= VMEM_BUDGET

    if B <= 16:
        return 16, 16                                      # pad tiny batch to one full tile

    for tb in (1024, 512, 256, 128, 64, 32, 16):
        if tb > B or not vmem_ok(tb):
            continue
        steps = -(-B // tb)
        if steps < 2 and tb > 16:
            continue                                       # keep 2nd TC busy on v7x
        if 8 * (steps * tb - B) > steps * tb:
            continue                                       # too much masked work in last tile
        return tb, B                                       # no wrapper pad; partial tile masked
    return 16, B


def complex_input_network_forward(obs, params, num_outputs):
    """obs: [B, C, H, W] -> (logits [B, num_outputs], value [B])."""
    B = obs.shape[0]
    D = math.prod(obs.shape[1:])
    # torch.reshape(obs_flat, [-1, D]) semantics (row-major); stays f32 — the
    # bf16 cast happens inside the kernel on the VMEM tile.
    x = jnp.reshape(obs, (B, D)).astype(jnp.float32)

    w1, b1, w2, b2, wh, bh = params
    n_pad = wh.shape[1]                                    # fused, 128-padded head width

    tb, b_rows = _choose_batch_tile(B, D, n_pad)
    if b_rows != B:                                        # only for B <= 16 (one tiny tile)
        x = jnp.pad(x, ((0, b_rows - B), (0, 0)))
    grid = ((b_rows + tb - 1) // tb,)

    bf16_tanh = _has_bf16_eup()
    kernel = functools.partial(_fused_mlp_kernel, bf16_tanh=bf16_tanh)

    cost = pl.CostEstimate(
        flops=2 * B * (D * HIDDEN + HIDDEN * HIDDEN
                       + HIDDEN * (num_outputs + 1)),
        transcendentals=2 * B * HIDDEN,
        bytes_accessed=(B * D * 4                          # x read (f32)
                        + (w1.size + w2.size + wh.size) * 2
                        + (b1.size + b2.size + bh.size) * 4
                        + b_rows * n_pad * 4),             # out write (f32)
    )

    out = pl.pallas_call(
        kernel,
        out_shape=jax.ShapeDtypeStruct((b_rows, n_pad), jnp.float32),
        grid=grid,
        in_specs=[
            pl.BlockSpec((tb, D), lambda i: (i, 0)),           # x: per batch tile
            pl.BlockSpec((D, HIDDEN), lambda i: (0, 0)),       # w1: resident
            pl.BlockSpec((1, HIDDEN), lambda i: (0, 0)),       # b1
            pl.BlockSpec((HIDDEN, HIDDEN), lambda i: (0, 0)),  # w2
            pl.BlockSpec((1, HIDDEN), lambda i: (0, 0)),       # b2
            pl.BlockSpec((HIDDEN, n_pad), lambda i: (0, 0)),   # fused head W
            pl.BlockSpec((1, n_pad), lambda i: (0, 0)),        # fused head b
        ],
        out_specs=pl.BlockSpec((tb, n_pad), lambda i: (i, 0)),
        compiler_params=pltpu.CompilerParams(
            dimension_semantics=("parallel",),                 # megacore on v7x
        ),
        cost_estimate=cost,
    )(x, w1, b1, w2, b2, wh, bh)

    logits = out[:B, :num_outputs]
    value = out[:B, num_outputs]                               # value_function()
    return logits, value


def init_params(key, in_dim, num_outputs):
    """Deterministic synthetic parameters (shapes match the torch module).

    Weights are stored bf16 (MXU operands); biases f32 (added post-
    accumulation).  The logits (256 x N) and value (256 x 1) heads are fused
    into a single (256, n_pad) weight / (1, n_pad) bias, n_pad a multiple of
    128, so the head matmul output is lane-dense.  Layout invariant: columns
    [0, N) = logits, column N = value, columns (N, n_pad) = zero padding.
    """
    ks = jax.random.split(key, 6)
    # feature extractor: fcnet_hiddens = [256, 256], tanh
    w1 = jax.random.normal(ks[0], (in_dim, HIDDEN), jnp.float32) * 0.05
    b1 = jax.random.normal(ks[1], (1, HIDDEN), jnp.float32) * 0.01
    w2 = jax.random.normal(ks[2], (HIDDEN, HIDDEN), jnp.float32) * 0.05
    b2 = jax.random.normal(ks[3], (1, HIDDEN), jnp.float32) * 0.01
    # heads (torch_normc_initializer(0.01) -> small-std init, zero bias)
    w3 = jax.random.normal(ks[4], (HIDDEN, num_outputs), jnp.float32) * 0.01
    b3 = jnp.zeros((1, num_outputs), jnp.float32)
    w4 = jax.random.normal(ks[5], (HIDDEN, 1), jnp.float32) * 0.01
    b4 = jnp.zeros((1, 1), jnp.float32)

    n_pad = _round_up(num_outputs + 1, LANE)
    wh = jnp.zeros((HIDDEN, n_pad), jnp.float32)
    wh = wh.at[:, :num_outputs].set(w3).at[:, num_outputs:num_outputs + 1].set(w4)
    bh = jnp.zeros((1, n_pad), jnp.float32)
    bh = bh.at[:, :num_outputs].set(b3).at[:, num_outputs:num_outputs + 1].set(b4)

    return (w1.astype(jnp.bfloat16), b1,
            w2.astype(jnp.bfloat16), b2,
            wh.astype(jnp.bfloat16), bh)


def _reference_matched(obs, params, num_outputs, bf16_tanh):
    """Pure-JAX reference mirroring the kernel's bf16-operand / f32-accumulate
    math (and tanh precision), for a tight-tolerance comparison."""
    B = obs.shape[0]
    x = jnp.reshape(obs, (B, -1)).astype(jnp.bfloat16)
    w1, b1, w2, b2, wh, bh = params
    a1 = jnp.dot(x, w1, preferred_element_type=jnp.float32) + b1
    h1 = jnp.tanh(a1.astype(jnp.bfloat16)) if bf16_tanh else jnp.tanh(a1).astype(jnp.bfloat16)
    a2 = jnp.dot(h1, w2, preferred_element_type=jnp.float32) + b2
    h2 = jnp.tanh(a2.astype(jnp.bfloat16)) if bf16_tanh else jnp.tanh(a2).astype(jnp.bfloat16)
    out = jnp.dot(h2, wh, preferred_element_type=jnp.float32) + bh
    return out[:, :num_outputs], out[:, num_outputs]


def _reference_f32(obs, params, num_outputs):
    """Full-f32 reference approximating the original torch module (looser tol)."""
    B = obs.shape[0]
    x = jnp.reshape(obs, (B, -1)).astype(jnp.float32)
    w1, b1, w2, b2, wh, bh = params
    h1 = jnp.tanh(x @ w1.astype(jnp.float32) + b1)
    h2 = jnp.tanh(h1 @ w2.astype(jnp.float32) + b2)
    out = h2 @ wh.astype(jnp.float32) + bh
    return out[:, :num_outputs], out[:, num_outputs]


if __name__ == "__main__":
    key = jax.random.PRNGKey(0)
    k_obs, k_par = jax.random.split(key)

    B, C, H, W = 2, 4, 16, 16           # obs space (C, H, W); batch of 2
    num_outputs = 8                      # action logits
    D = C * H * W                        # flatten_dims = 1024

    obs = jax.random.normal(k_obs, (B, C, H, W), jnp.float32)
    params = init_params(k_par, D, num_outputs)

    fwd = jax.jit(functools.partial(complex_input_network_forward,
                                    num_outputs=num_outputs))
    logits, value = fwd(obs, params)
    logits = jax.block_until_ready(logits)
    value = jax.block_until_ready(value)

    assert logits.shape == (B, num_outputs)
    assert value.shape == (B,)

    # Tight check against the same-precision reference.
    bf16_tanh = _has_bf16_eup()
    ref_logits, ref_value = _reference_matched(obs, params, num_outputs, bf16_tanh)
    assert jnp.allclose(logits, ref_logits, atol=2e-2, rtol=2e-2)
    assert jnp.allclose(value, ref_value, atol=2e-2, rtol=2e-2)

    # Looser check against a full-f32 reference (torch-module-like math).
    f32_logits, f32_value = _reference_f32(obs, params, num_outputs)
    assert jnp.allclose(logits, f32_logits, atol=5e-2, rtol=5e-2)
    assert jnp.allclose(value, f32_value, atol=5e-2, rtol=5e-2)

    print("KERNEL_OK")
</pallas_src>

<mosaic_0001>
module attributes {stable_mosaic.version = 11 : i64} {
  func.func @_fused_mlp_kernel(%arg0: i32, %arg1: memref<16x1024xf32, #tpu.memory_space<vmem>>, %arg2: memref<1024x256xbf16, #tpu.memory_space<vmem>>, %arg3: memref<1x256xf32, #tpu.memory_space<vmem>>, %arg4: memref<256x256xbf16, #tpu.memory_space<vmem>>, %arg5: memref<1x256xf32, #tpu.memory_space<vmem>>, %arg6: memref<256x128xbf16, #tpu.memory_space<vmem>>, %arg7: memref<1x128xf32, #tpu.memory_space<vmem>>, %arg8: memref<16x128xf32, #tpu.memory_space<vmem>>) attributes {dimension_semantics = [#tpu.dimension_semantics<parallel>], iteration_bounds = array<i64: 1>, scalar_prefetch = 0 : i64, scratch_operands = 0 : i64, tpu.core_type = #tpu.core_type<tc>, window_params = [{transform_indices = @transform_0, window_bounds = array<i64: 16, 1024>}, {pipeline_mode = #tpu.pipeline_mode<synchronous>, transform_indices = @transform_1, window_bounds = array<i64: 1024, 256>}, {pipeline_mode = #tpu.pipeline_mode<synchronous>, transform_indices = @transform_2, window_bounds = array<i64: 1, 256>}, {pipeline_mode = #tpu.pipeline_mode<synchronous>, transform_indices = @transform_3, window_bounds = array<i64: 256, 256>}, {pipeline_mode = #tpu.pipeline_mode<synchronous>, transform_indices = @transform_4, window_bounds = array<i64: 1, 256>}, {pipeline_mode = #tpu.pipeline_mode<synchronous>, transform_indices = @transform_5, window_bounds = array<i64: 256, 128>}, {pipeline_mode = #tpu.pipeline_mode<synchronous>, transform_indices = @transform_6, window_bounds = array<i64: 1, 128>}, {transform_indices = @transform_7, window_bounds = array<i64: 16, 128>}]} {
    %c0 = arith.constant 0 : index
    %c0_0 = arith.constant 0 : index
    %0 = vector.load %arg1[%c0, %c0_0] : memref<16x1024xf32, #tpu.memory_space<vmem>>, vector<16x1024xf32>
    %1 = arith.truncf %0 : vector<16x1024xf32> to vector<16x1024xbf16>
    %c0_1 = arith.constant 0 : index
    %c0_2 = arith.constant 0 : index
    %2 = vector.load %arg2[%c0_1, %c0_2] : memref<1024x256xbf16, #tpu.memory_space<vmem>>, vector<1024x256xbf16>
    %cst = arith.constant dense<0.000000e+00> : vector<16x256xf32>
    %3 = tpu.matmul %1, %2, %cst {dimension_numbers = #tpu.dot_dimension_numbers<[1], [0], [0], [1], [0, 0, 1, 1], [], []>} : vector<16x1024xbf16>, vector<1024x256xbf16>, vector<16x256xf32> -> vector<16x256xf32>
    %c0_3 = arith.constant 0 : index
    %c0_4 = arith.constant 0 : index
    %4 = vector.load %arg3[%c0_3, %c0_4] : memref<1x256xf32, #tpu.memory_space<vmem>>, vector<1x256xf32>
    %5 = vector.broadcast %4 : vector<1x256xf32> to vector<16x256xf32>
    %6 = arith.addf %3, %5 : vector<16x256xf32>
    %7 = math.tanh %6 : vector<16x256xf32>
    %8 = arith.truncf %7 : vector<16x256xf32> to vector<16x256xbf16>
    %c0_5 = arith.constant 0 : index
    %c0_6 = arith.constant 0 : index
    %9 = vector.load %arg4[%c0_5, %c0_6] : memref<256x256xbf16, #tpu.memory_space<vmem>>, vector<256x256xbf16>
    %cst_7 = arith.constant dense<0.000000e+00> : vector<16x256xf32>
    %10 = tpu.matmul %8, %9, %cst_7 {dimension_numbers = #tpu.dot_dimension_numbers<[1], [0], [0], [1], [0, 0, 1, 1], [], []>} : vector<16x256xbf16>, vector<256x256xbf16>, vector<16x256xf32> -> vector<16x256xf32>
    %c0_8 = arith.constant 0 : index
    %c0_9 = arith.constant 0 : index
    %11 = vector.load %arg5[%c0_8, %c0_9] : memref<1x256xf32, #tpu.memory_space<vmem>>, vector<1x256xf32>
    %12 = vector.broadcast %11 : vector<1x256xf32> to vector<16x256xf32>
    %13 = arith.addf %10, %12 : vector<16x256xf32>
    %14 = math.tanh %13 : vector<16x256xf32>
    %15 = arith.truncf %14 : vector<16x256xf32> to vector<16x256xbf16>
    %c0_10 = arith.constant 0 : index
    %c0_11 = arith.constant 0 : index
    %16 = vector.load %arg6[%c0_10, %c0_11] : memref<256x128xbf16, #tpu.memory_space<vmem>>, vector<256x128xbf16>
    %cst_12 = arith.constant dense<0.000000e+00> : vector<16x128xf32>
    %17 = tpu.matmul %15, %16, %cst_12 {dimension_numbers = #tpu.dot_dimension_numbers<[1], [0], [0], [1], [0, 0, 1, 1], [], []>} : vector<16x256xbf16>, vector<256x128xbf16>, vector<16x128xf32> -> vector<16x128xf32>
    %c0_13 = arith.constant 0 : index
    %c0_14 = arith.constant 0 : index
    %18 = vector.load %arg7[%c0_13, %c0_14] : memref<1x128xf32, #tpu.memory_space<vmem>>, vector<1x128xf32>
    %19 = vector.broadcast %18 : vector<1x128xf32> to vector<16x128xf32>
    %20 = arith.addf %17, %19 : vector<16x128xf32>
    %c0_15 = arith.constant 0 : index
    %c0_16 = arith.constant 0 : index
    %21 = vector.load %arg8[%c0_15, %c0_16] : memref<16x128xf32, #tpu.memory_space<vmem>>, vector<16x128xf32>
    tpu.vector_store %arg8[%c0_15, %c0_16], %20 {strides = array<i32>} : memref<16x128xf32, #tpu.memory_space<vmem>>, vector<16x128xf32>,
    return
  }
  func.func @transform_0(%arg0: i32) -> (i32, i32) {
    %c0_i32 = arith.constant 0 : i32
    %c0_i32_0 = arith.constant 0 : i32
    return %arg0, %c0_i32 : i32, i32
  }
  func.func @transform_1(%arg0: i32) -> (i32, i32) {
    %c0_i32 = arith.constant 0 : i32
    %c0_i32_0 = arith.constant 0 : i32
    %c0_i32_1 = arith.constant 0 : i32
    return %c0_i32, %c0_i32_0 : i32, i32
  }
  func.func @transform_2(%arg0: i32) -> (i32, i32) {
    %c0_i32 = arith.constant 0 : i32
    %c0_i32_0 = arith.constant 0 : i32
    %c0_i32_1 = arith.constant 0 : i32
    return %c0_i32, %c0_i32_0 : i32, i32
  }
  func.func @transform_3(%arg0: i32) -> (i32, i32) {
    %c0_i32 = arith.constant 0 : i32
    %c0_i32_0 = arith.constant 0 : i32
    %c0_i32_1 = arith.constant 0 : i32
    return %c0_i32, %c0_i32_0 : i32, i32
  }
  func.func @transform_4(%arg0: i32) -> (i32, i32) {
    %c0_i32 = arith.constant 0 : i32
    %c0_i32_0 = arith.constant 0 : i32
    %c0_i32_1 = arith.constant 0 : i32
    return %c0_i32, %c0_i32_0 : i32, i32
  }
  func.func @transform_5(%arg0: i32) -> (i32, i32) {
    %c0_i32 = arith.constant 0 : i32
    %c0_i32_0 = arith.constant 0 : i32
    %c0_i32_1 = arith.constant 0 : i32
    return %c0_i32, %c0_i32_0 : i32, i32
  }
  func.func @transform_6(%arg0: i32) -> (i32, i32) {
    %c0_i32 = arith.constant 0 : i32
    %c0_i32_0 = arith.constant 0 : i32
    %c0_i32_1 = arith.constant 0 : i32
    return %c0_i32, %c0_i32_0 : i32, i32
  }
  func.func @transform_7(%arg0: i32) -> (i32, i32) {
    %c0_i32 = arith.constant 0 : i32
    %c0_i32_0 = arith.constant 0 : i32
    return %arg0, %c0_i32 : i32, i32
  }
}

</mosaic_0001>

<llo_original>
// kernel: complex_input_network_forward.1
$region0: #{complex_input_network_forward.1}
  #allocation0 [shape = 'u32[]', space=smem, size = 0x4, offset = 0x4, fixed_abs, tag = 'smem constant byte address 0x4 - core index']
  #allocation1 [shape = 'u32[144,128]{1,0:T(1,128)}', space=vmem, size = 0x12000, scoped, tag = 'internal scratch']
  %s0 = inlined_call_operand.vmem [shape: f32[16,1024], index: 0, kind: input, shape index: {}]
  %s1 = inlined_call_operand.hbm [shape: bf16[1024,256], index: 1, kind: input, shape index: {}]
  %s2 = inlined_call_operand.vmem [shape: f32[1,256], index: 2, kind: input, shape index: {}]
  %s3 = inlined_call_operand.vmem [shape: bf16[256,256], index: 3, kind: input, shape index: {}]
  %s4 = inlined_call_operand.vmem [shape: f32[1,256], index: 4, kind: input, shape index: {}]
  %s5 = inlined_call_operand.hbm [shape: bf16[256,128], index: 5, kind: input, shape index: {}]
  %s6 = inlined_call_operand.vmem [shape: f32[1,128], index: 6, kind: input, shape index: {}]
  %s7 = inlined_call_operand.vmem [shape: f32[16,128], index: 7, kind: output, shape index: {}]
  %s8 = sld [smem:[#allocation0]]
  $region46: #{complex_input_network_forward.1} parent=0
    _
  %s10 = ssub.s32 1, %s8
  %s11 = scalar_select 0, %s10, %s8
  $region1: #{complex_input_network_forward.1} parent=0
    #allocation2 [shape = 'u8[524288]{0}', space=vmem, size = 0x80000, scoped, tag = 'input window, operand 1, single buffered']
    #allocation3 [shape = 's32[1]{0}', space=sflag, size = 0x4, scoped, tag = 'scoped memory for complex_input_network_forward.1']
    #allocation4 [shape = 'u8[65536]{0}', space=vmem, size = 0x10000, scoped, tag = 'input window, operand 5, single buffered']
    #allocation5 [shape = 's32[1]{0}', space=sflag, size = 0x4, scoped, tag = 'scoped memory for complex_input_network_forward.1']
    %12 = vsyncpa [#allocation3], 0
    %13 = vsyncpa [#allocation5], 0
    // Predicated region
    $region2: #{complex_input_network_forward.1} parent=1 // pred_check
      _
    $region3: #{complex_input_network_forward.1} parent=1 // pred_check_branch
      %15 = sbr.rel (0) target = $region5
    $region4: #{complex_input_network_forward.1} parent=1 // pred_region
      _
    $region5: #{complex_input_network_forward.1} parent=1 // pred_fallthru
      _
    // Predicated region
    $region6: #{complex_input_network_forward.1} parent=1 // pred_check
      _
    $region7: #{complex_input_network_forward.1} parent=1 // pred_check_branch
      %17 = sbr.rel (0) target = $region9
    $region8: #{complex_input_network_forward.1} parent=1 // pred_region
      %s19 = ssub.s32 16384, 16384
      %20 = vsyncadd [#allocation3], %s19
      %s21 = sshll.u32 [#allocation2], 4
      %s22 = int_to_ptr.vmem [resolvable:$true] %s21
      %27 = dma.hbm_to_vmem [thread:$0]  %s1, 16384, %s22, [#allocation3], 128, 128, 8
    $region9: #{complex_input_network_forward.1} parent=1 // pred_fallthru
      _
    // Predicated region
    $region10: #{complex_input_network_forward.1} parent=1 // pred_check
      _
    $region11: #{complex_input_network_forward.1} parent=1 // pred_check_branch
      %29 = sbr.rel (0) target = $region13
    $region12: #{complex_input_network_forward.1} parent=1 // pred_region
      _
    $region13: #{complex_input_network_forward.1} parent=1 // pred_fallthru
      _
    // Predicated region
    $region14: #{complex_input_network_forward.1} parent=1 // pred_check
      _
    $region15: #{complex_input_network_forward.1} parent=1 // pred_check_branch
      %31 = sbr.rel (0) target = $region17
    $region16: #{complex_input_network_forward.1} parent=1 // pred_region
      _
    $region17: #{complex_input_network_forward.1} parent=1 // pred_fallthru
      _
    // Predicated region
    $region18: #{complex_input_network_forward.1} parent=1 // pred_check
      _
    $region19: #{complex_input_network_forward.1} parent=1 // pred_check_branch
      %33 = sbr.rel (0) target = $region21
    $region20: #{complex_input_network_forward.1} parent=1 // pred_region
      _
    $region21: #{complex_input_network_forward.1} parent=1 // pred_fallthru
      _
    // Predicated region
    $region22: #{complex_input_network_forward.1} parent=1 // pred_check
      _
    $region23: #{complex_input_network_forward.1} parent=1 // pred_check_branch
      %35 = sbr.rel (0) target = $region25
    $region24: #{complex_input_network_forward.1} parent=1 // pred_region
      %s37 = ssub.s32 2048, 2048
      %38 = vsyncadd [#allocation5], %s37
      %s39 = sshll.u32 [#allocation4], 4
      %s40 = int_to_ptr.vmem [resolvable:$true] %s39
      %45 = dma.hbm_to_vmem [thread:$0]  %s5, 2048, %s40, [#allocation5], 64, 64, 4
    $region25: #{complex_input_network_forward.1} parent=1 // pred_fallthru
      _
    // Predicated region
    $region26: #{complex_input_network_forward.1} parent=1 // pred_check
      _
    $region27: #{complex_input_network_forward.1} parent=1 // pred_check_branch
      %47 = sbr.rel (0) target = $region29
    $region28: #{complex_input_network_forward.1} parent=1 // pred_region
      _
    $region29: #{complex_input_network_forward.1} parent=1 // pred_fallthru
      _
    // Predicated region
    $region30: #{complex_input_network_forward.1} parent=1 // pred_check
      _
    $region31: #{complex_input_network_forward.1} parent=1 // pred_check_branch
      %49 = sbr.rel (0) target = $region33
    $region32: #{complex_input_network_forward.1} parent=1 // pred_region
      %50 = dma.done [#allocation3], 16384
    $region33: #{complex_input_network_forward.1} parent=1 // pred_fallthru
      _
    // Predicated region
    $region34: #{complex_input_network_forward.1} parent=1 // pred_check
      _
    $region35: #{complex_input_network_forward.1} parent=1 // pred_check_branch
      %52 = sbr.rel (0) target = $region37
    $region36: #{complex_input_network_forward.1} parent=1 // pred_region
      %53 = dma.done [#allocation5], 2048
    $region37: #{complex_input_network_forward.1} parent=1 // pred_fallthru
      _
    %v55 = vld [vmem:[%s0] sm:$0xff]
    %v56 = vld [vmem:[%s0 + $0x8] sm:$0xff]
    %v57 = vld [vmem:[%s0 + $0x10] sm:$0xff]
    %v58 = vld [vmem:[%s0 + $0x18] sm:$0xff]
    %v59 = vld [vmem:[%s0 + $0x20] sm:$0xff]
    %v60 = vld [vmem:[%s0 + $0x28] sm:$0xff]
    %v61 = vld [vmem:[%s0 + $0x30] sm:$0xff]
    %v62 = vld [vmem:[%s0 + $0x38] sm:$0xff]
    %v63 = vld [vmem:[%s0 + $0x40] sm:$0xff]
    %v64 = vld [vmem:[%s0 + $0x48] sm:$0xff]
    %v65 = vld [vmem:[%s0 + $0x50] sm:$0xff]
    %v66 = vld [vmem:[%s0 + $0x58] sm:$0xff]
    %v67 = vld [vmem:[%s0 + $0x60] sm:$0xff]
    %v68 = vld [vmem:[%s0 + $0x68] sm:$0xff]
    %v69 = vld [vmem:[%s0 + $0x70] sm:$0xff]
    %v70 = vld [vmem:[%s0 + $0x78] sm:$0xff]
    %v71 = vpack.c.bf16 %v63, %v55
    %v72 = vpack.c.bf16 %v64, %v56
    %v73 = vpack.c.bf16 %v65, %v57
    %v74 = vpack.c.bf16 %v66, %v58
    %v75 = vpack.c.bf16 %v67, %v59
    %v76 = vpack.c.bf16 %v68, %v60
    %v77 = vpack.c.bf16 %v69, %v61
    %v78 = vpack.c.bf16 %v70, %v62
    %v79 = vld [vmem:[#allocation2] sm:$0xff]
    %v80 = vld [vmem:[#allocation2 + $0x8] sm:$0xff]
    %v81 = vld [vmem:[#allocation2 + $0x10] sm:$0xff]
    %v82 = vld [vmem:[#allocation2 + $0x18] sm:$0xff]
    %v83 = vld [vmem:[#allocation2 + $0x20] sm:$0xff]
    %v84 = vld [vmem:[#allocation2 + $0x28] sm:$0xff]
    %v85 = vld [vmem:[#allocation2 + $0x30] sm:$0xff]
    %v86 = vld [vmem:[#allocation2 + $0x38] sm:$0xff]
    %v87 = vld [vmem:[#allocation2 + $0x40] sm:$0xff]
    %v88 = vld [vmem:[#allocation2 + $0x48] sm:$0xff]
    %v89 = vld [vmem:[#allocation2 + $0x50] sm:$0xff]
    %v90 = vld [vmem:[#allocation2 + $0x58] sm:$0xff]
    %v91 = vld [vmem:[#allocation2 + $0x60] sm:$0xff]
    %v92 = vld [vmem:[#allocation2 + $0x68] sm:$0xff]
    %v93 = vld [vmem:[#allocation2 + $0x70] sm:$0xff]
    %v94 = vld [vmem:[#allocation2 + $0x78] sm:$0xff]
    %v95 = vld [vmem:[#allocation2 + $0x80] sm:$0xff]
    %v96 = vld [vmem:[#allocation2 + $0x88] sm:$0xff]
    %v97 = vld [vmem:[#allocation2 + $0x90] sm:$0xff]
    %v98 = vld [vmem:[#allocation2 + $0x98] sm:$0xff]
    %v99 = vld [vmem:[#allocation2 + $0xa0] sm:$0xff]
    %v100 = vld [vmem:[#allocation2 + $0xa8] sm:$0xff]
    %v101 = vld [vmem:[#allocation2 + $0xb0] sm:$0xff]
    %v102 = vld [vmem:[#allocation2 + $0xb8] sm:$0xff]
    %v103 = vld [vmem:[#allocation2 + $0xc0] sm:$0xff]
    %v104 = vld [vmem:[#allocation2 + $0xc8] sm:$0xff]
    %v105 = vld [vmem:[#allocation2 + $0xd0] sm:$0xff]
    %v106 = vld [vmem:[#allocation2 + $0xd8] sm:$0xff]
    %v107 = vld [vmem:[#allocation2 + $0xe0] sm:$0xff]
    %v108 = vld [vmem:[#allocation2 + $0xe8] sm:$0xff]
    %v109 = vld [vmem:[#allocation2 + $0xf0] sm:$0xff]
    %v110 = vld [vmem:[#allocation2 + $0xf8] sm:$0xff]
    %v111 = vld [vmem:[#allocation2 + $0x100] sm:$0xff]
    %v112 = vld [vmem:[#allocation2 + $0x108] sm:$0xff]
    %v113 = vld [vmem:[#allocation2 + $0x110] sm:$0xff]
    %v114 = vld [vmem:[#allocation2 + $0x118] sm:$0xff]
    %v115 = vld [vmem:[#allocation2 + $0x120] sm:$0xff]
    %v116 = vld [vmem:[#allocation2 + $0x128] sm:$0xff]
    %v117 = vld [vmem:[#allocation2 + $0x130] sm:$0xff]
    %v118 = vld [vmem:[#allocation2 + $0x138] sm:$0xff]
    %v119 = vld [vmem:[#allocation2 + $0x140] sm:$0xff]
    %v120 = vld [vmem:[#allocation2 + $0x148] sm:$0xff]
    %v121 = vld [vmem:[#allocation2 + $0x150] sm:$0xff]
    %v122 = vld [vmem:[#allocation2 + $0x158] sm:$0xff]
    %v123 = vld [vmem:[#allocation2 + $0x160] sm:$0xff]
    %v124 = vld [vmem:[#allocation2 + $0x168] sm:$0xff]
    %v125 = vld [vmem:[#allocation2 + $0x170] sm:$0xff]
    %v126 = vld [vmem:[#allocation2 + $0x178] sm:$0xff]
    %v127 = vld [vmem:[#allocation2 + $0x180] sm:$0xff]
    %v128 = vld [vmem:[#allocation2 + $0x188] sm:$0xff]
    %v129 = vld [vmem:[#allocation2 + $0x190] sm:$0xff]
    %v130 = vld [vmem:[#allocation2 + $0x198] sm:$0xff]
    %v131 = vld [vmem:[#allocation2 + $0x1a0] sm:$0xff]
    %v132 = vld [vmem:[#allocation2 + $0x1a8] sm:$0xff]
    %v133 = vld [vmem:[#allocation2 + $0x1b0] sm:$0xff]
    %v134 = vld [vmem:[#allocation2 + $0x1b8] sm:$0xff]
    %v135 = vld [vmem:[#allocation2 + $0x1c0] sm:$0xff]
    %v136 = vld [vmem:[#allocation2 + $0x1c8] sm:$0xff]
    %v137 = vld [vmem:[#allocation2 + $0x1d0] sm:$0xff]
    %v138 = vld [vmem:[#allocation2 + $0x1d8] sm:$0xff]
    %v139 = vld [vmem:[#allocation2 + $0x1e0] sm:$0xff]
    %v140 = vld [vmem:[#allocation2 + $0x1e8] sm:$0xff]
    %v141 = vld [vmem:[#allocation2 + $0x1f0] sm:$0xff]
    %v142 = vld [vmem:[#allocation2 + $0x1f8] sm:$0xff]
    %v143 = vld [vmem:[#allocation2 + $0x200] sm:$0xff]
    %v144 = vld [vmem:[#allocation2 + $0x208] sm:$0xff]
    %v145 = vld [vmem:[#allocation2 + $0x210] sm:$0xff]
    %v146 = vld [vmem:[#allocation2 + $0x218] sm:$0xff]
    %v147 = vld [vmem:[#allocation2 + $0x220] sm:$0xff]
    %v148 = vld [vmem:[#allocation2 + $0x228] sm:$0xff]
    %v149 = vld [vmem:[#allocation2 + $0x230] sm:$0xff]
    %v150 = vld [vmem:[#allocation2 + $0x238] sm:$0xff]
    %v151 = vld [vmem:[#allocation2 + $0x240] sm:$0xff]
    %v152 = vld [vmem:[#allocation2 + $0x248] sm:$0xff]
    %v153 = vld [vmem:[#allocation2 + $0x250] sm:$0xff]
    %v154 = vld [vmem:[#allocation2 + $0x258] sm:$0xff]
    %v155 = vld [vmem:[#allocation2 + $0x260] sm:$0xff]
    %v156 = vld [vmem:[#allocation2 + $0x268] sm:$0xff]
    %v157 = vld [vmem:[#allocation2 + $0x270] sm:$0xff]
    %v158 = vld [vmem:[#allocation2 + $0x278] sm:$0xff]
    %v159 = vld [vmem:[#allocation2 + $0x280] sm:$0xff]
    %v160 = vld [vmem:[#allocation2 + $0x288] sm:$0xff]
    %v161 = vld [vmem:[#allocation2 + $0x290] sm:$0xff]
    %v162 = vld [vmem:[#allocation2 + $0x298] sm:$0xff]
    %v163 = vld [vmem:[#allocation2 + $0x2a0] sm:$0xff]
    %v164 = vld [vmem:[#allocation2 + $0x2a8] sm:$0xff]
    %v165 = vld [vmem:[#allocation2 + $0x2b0] sm:$0xff]
    %v166 = vld [vmem:[#allocation2 + $0x2b8] sm:$0xff]
    %v167 = vld [vmem:[#allocation2 + $0x2c0] sm:$0xff]
    %v168 = vld [vmem:[#allocation2 + $0x2c8] sm:$0xff]
    %v169 = vld [vmem:[#allocation2 + $0x2d0] sm:$0xff]
    %v170 = vld [vmem:[#allocation2 + $0x2d8] sm:$0xff]
    %v171 = vld [vmem:[#allocation2 + $0x2e0] sm:$0xff]
    %v172 = vld [vmem:[#allocation2 + $0x2e8] sm:$0xff]
    %v173 = vld [vmem:[#allocation2 + $0x2f0] sm:$0xff]
    %v174 = vld [vmem:[#allocation2 + $0x2f8] sm:$0xff]
    %v175 = vld [vmem:[#allocation2 + $0x300] sm:$0xff]
    %v176 = vld [vmem:[#allocation2 + $0x308] sm:$0xff]
    %v177 = vld [vmem:[#allocation2 + $0x310] sm:$0xff]
    %v178 = vld [vmem:[#allocation2 + $0x318] sm:$0xff]
    %v179 = vld [vmem:[#allocation2 + $0x320] sm:$0xff]
    %v180 = vld [vmem:[#allocation2 + $0x328] sm:$0xff]
    %v181 = vld [vmem:[#allocation2 + $0x330] sm:$0xff]
    %v182 = vld [vmem:[#allocation2 + $0x338] sm:$0xff]
    %v183 = vld [vmem:[#allocation2 + $0x340] sm:$0xff]
    %v184 = vld [vmem:[#allocation2 + $0x348] sm:$0xff]
    %v185 = vld [vmem:[#allocation2 + $0x350] sm:$0xff]
    %v186 = vld [vmem:[#allocation2 + $0x358] sm:$0xff]
    %v187 = vld [vmem:[#allocation2 + $0x360] sm:$0xff]
    %v188 = vld [vmem:[#allocation2 + $0x368] sm:$0xff]
    %v189 = vld [vmem:[#allocation2 + $0x370] sm:$0xff]
    %v190 = vld [vmem:[#allocation2 + $0x378] sm:$0xff]
    %v191 = vld [vmem:[#allocation2 + $0x380] sm:$0xff]
    %v192 = vld [vmem:[#allocation2 + $0x388] sm:$0xff]
    %v193 = vld [vmem:[#allocation2 + $0x390] sm:$0xff]
    %v194 = vld [vmem:[#allocation2 + $0x398] sm:$0xff]
    %v195 = vld [vmem:[#allocation2 + $0x3a0] sm:$0xff]
    %v196 = vld [vmem:[#allocation2 + $0x3a8] sm:$0xff]
    %v197 = vld [vmem:[#allocation2 + $0x3b0] sm:$0xff]
    %v198 = vld [vmem:[#allocation2 + $0x3b8] sm:$0xff]
    %v199 = vld [vmem:[#allocation2 + $0x3c0] sm:$0xff]
    %v200 = vld [vmem:[#allocation2 + $0x3c8] sm:$0xff]
    %v201 = vld [vmem:[#allocation2 + $0x3d0] sm:$0xff]
    %v202 = vld [vmem:[#allocation2 + $0x3d8] sm:$0xff]
    %v203 = vld [vmem:[#allocation2 + $0x3e0] sm:$0xff]
    %v204 = vld [vmem:[#allocation2 + $0x3e8] sm:$0xff]
    %v205 = vld [vmem:[#allocation2 + $0x3f0] sm:$0xff]
    %v206 = vld [vmem:[#allocation2 + $0x3f8] sm:$0xff]
    %v207 = vld [vmem:[%s2] sm:$0x3]
    %v209 = vlaneseq
    %v210 = vshrl.u32 %v209, 7
    %v211 = vsub.s32 0, %v210
    %v212 = vrot.slane %v207, %v211
    %v213 = vlaneseq
    %v214 = vshrl.u32 %v213, 7
    %v215 = vsub.s32 1, %v214
    %v216 = vrot.slane %v207, %v215
    %v347 = vunpack.c.l.b16 %v79
    %v348 = vunpack.c.h.b16 %v79
    %v349 = vunpack.c.l.b16 %v80
    %v350 = vunpack.c.h.b16 %v80
    %v351 = vunpack.c.l.b16 %v81
    %v352 = vunpack.c.h.b16 %v81
    %v353 = vunpack.c.l.b16 %v82
    %v354 = vunpack.c.h.b16 %v82
    %v355 = vunpack.c.l.b16 %v83
    %v356 = vunpack.c.h.b16 %v83
    %v357 = vunpack.c.l.b16 %v84
    %v358 = vunpack.c.h.b16 %v84
    %v359 = vunpack.c.l.b16 %v85
    %v360 = vunpack.c.h.b16 %v85
    %v361 = vunpack.c.l.b16 %v86
    %v362 = vunpack.c.h.b16 %v86
    %v363 = vunpack.c.l.b16 %v87
    %v364 = vunpack.c.h.b16 %v87
    %v365 = vunpack.c.l.b16 %v88
    %v366 = vunpack.c.h.b16 %v88
    %v367 = vunpack.c.l.b16 %v89
    %v368 = vunpack.c.h.b16 %v89
    %v369 = vunpack.c.l.b16 %v90
    %v370 = vunpack.c.h.b16 %v90
    %v371 = vunpack.c.l.b16 %v91
    %v372 = vunpack.c.h.b16 %v91
    %v373 = vunpack.c.l.b16 %v92
    %v374 = vunpack.c.h.b16 %v92
    %v375 = vunpack.c.l.b16 %v93
    %v376 = vunpack.c.h.b16 %v93
    %v377 = vunpack.c.l.b16 %v94
    %v378 = vunpack.c.h.b16 %v94
    %v379 = vunpack.c.l.b16 %v95
    %v380 = vunpack.c.h.b16 %v95
    %v381 = vunpack.c.l.b16 %v96
    %v382 = vunpack.c.h.b16 %v96
    %v383 = vunpack.c.l.b16 %v97
    %v384 = vunpack.c.h.b16 %v97
    %v385 = vunpack.c.l.b16 %v98
    %v386 = vunpack.c.h.b16 %v98
    %v387 = vunpack.c.l.b16 %v99
    %v388 = vunpack.c.h.b16 %v99
    %v389 = vunpack.c.l.b16 %v100
    %v390 = vunpack.c.h.b16 %v100
    %v391 = vunpack.c.l.b16 %v101
    %v392 = vunpack.c.h.b16 %v101
    %v393 = vunpack.c.l.b16 %v102
    %v394 = vunpack.c.h.b16 %v102
    %v395 = vunpack.c.l.b16 %v103
    %v396 = vunpack.c.h.b16 %v103
    %v397 = vunpack.c.l.b16 %v104
    %v398 = vunpack.c.h.b16 %v104
    %v399 = vunpack.c.l.b16 %v105
    %v400 = vunpack.c.h.b16 %v105
    %v401 = vunpack.c.l.b16 %v106
    %v402 = vunpack.c.h.b16 %v106
    %v403 = vunpack.c.l.b16 %v107
    %v404 = vunpack.c.h.b16 %v107
    %v405 = vunpack.c.l.b16 %v108
    %v406 = vunpack.c.h.b16 %v108
    %v407 = vunpack.c.l.b16 %v109
    %v408 = vunpack.c.h.b16 %v109
    %v409 = vunpack.c.l.b16 %v110
    %v410 = vunpack.c.h.b16 %v110
    %v411 = vunpack.c.l.b16 %v111
    %v412 = vunpack.c.h.b16 %v111
    %v413 = vunpack.c.l.b16 %v112
    %v414 = vunpack.c.h.b16 %v112
    %v415 = vunpack.c.l.b16 %v113
    %v416 = vunpack.c.h.b16 %v113
    %v417 = vunpack.c.l.b16 %v114
    %v418 = vunpack.c.h.b16 %v114
    %v419 = vunpack.c.l.b16 %v115
    %v420 = vunpack.c.h.b16 %v115
    %v421 = vunpack.c.l.b16 %v116
    %v422 = vunpack.c.h.b16 %v116
    %v423 = vunpack.c.l.b16 %v117
    %v424 = vunpack.c.h.b16 %v117
    %v425 = vunpack.c.l.b16 %v118
    %v426 = vunpack.c.h.b16 %v118
    %v427 = vunpack.c.l.b16 %v119
    %v428 = vunpack.c.h.b16 %v119
    %v429 = vunpack.c.l.b16 %v120
    %v430 = vunpack.c.h.b16 %v120
    %v431 = vunpack.c.l.b16 %v121
    %v432 = vunpack.c.h.b16 %v121
    %v433 = vunpack.c.l.b16 %v122
    %v434 = vunpack.c.h.b16 %v122
    %v435 = vunpack.c.l.b16 %v123
    %v436 = vunpack.c.h.b16 %v123
    %v437 = vunpack.c.l.b16 %v124
    %v438 = vunpack.c.h.b16 %v124
    %v439 = vunpack.c.l.b16 %v125
    %v440 = vunpack.c.h.b16 %v125
    %v441 = vunpack.c.l.b16 %v126
    %v442 = vunpack.c.h.b16 %v126
    %v443 = vunpack.c.l.b16 %v127
    %v444 = vunpack.c.h.b16 %v127
    %v445 = vunpack.c.l.b16 %v128
    %v446 = vunpack.c.h.b16 %v128
    %v447 = vunpack.c.l.b16 %v129
    %v448 = vunpack.c.h.b16 %v129
    %v449 = vunpack.c.l.b16 %v130
    %v450 = vunpack.c.h.b16 %v130
    %v451 = vunpack.c.l.b16 %v131
    %v452 = vunpack.c.h.b16 %v131
    %v453 = vunpack.c.l.b16 %v132
    %v454 = vunpack.c.h.b16 %v132
    %v455 = vunpack.c.l.b16 %v133
    %v456 = vunpack.c.h.b16 %v133
    %v457 = vunpack.c.l.b16 %v134
    %v458 = vunpack.c.h.b16 %v134
    %v459 = vunpack.c.l.b16 %v135
    %v460 = vunpack.c.h.b16 %v135
    %v461 = vunpack.c.l.b16 %v136
    %v462 = vunpack.c.h.b16 %v136
    %v463 = vunpack.c.l.b16 %v137
    %v464 = vunpack.c.h.b16 %v137
    %v465 = vunpack.c.l.b16 %v138
    %v466 = vunpack.c.h.b16 %v138
    %v467 = vunpack.c.l.b16 %v139
    %v468 = vunpack.c.h.b16 %v139
    %v469 = vunpack.c.l.b16 %v140
    %v470 = vunpack.c.h.b16 %v140
    %v471 = vunpack.c.l.b16 %v141
    %v472 = vunpack.c.h.b16 %v141
    %v473 = vunpack.c.l.b16 %v142
    %v474 = vunpack.c.h.b16 %v142
    %v475 = vunpack.c.l.b16 %v143
    %v476 = vunpack.c.h.b16 %v143
    %v477 = vunpack.c.l.b16 %v144
    %v478 = vunpack.c.h.b16 %v144
    %v479 = vunpack.c.l.b16 %v145
    %v480 = vunpack.c.h.b16 %v145
    %v481 = vunpack.c.l.b16 %v146
    %v482 = vunpack.c.h.b16 %v146
    %v483 = vunpack.c.l.b16 %v147
    %v484 = vunpack.c.h.b16 %v147
    %v485 = vunpack.c.l.b16 %v148
    %v486 = vunpack.c.h.b16 %v148
    %v487 = vunpack.c.l.b16 %v149
    %v488 = vunpack.c.h.b16 %v149
    %v489 = vunpack.c.l.b16 %v150
    %v490 = vunpack.c.h.b16 %v150
    %v491 = vunpack.c.l.b16 %v151
    %v492 = vunpack.c.h.b16 %v151
    %v493 = vunpack.c.l.b16 %v152
    %v494 = vunpack.c.h.b16 %v152
    %v495 = vunpack.c.l.b16 %v153
    %v496 = vunpack.c.h.b16 %v153
    %v497 = vunpack.c.l.b16 %v154
    %v498 = vunpack.c.h.b16 %v154
    %v499 = vunpack.c.l.b16 %v155
    %v500 = vunpack.c.h.b16 %v155
    %v501 = vunpack.c.l.b16 %v156
    %v502 = vunpack.c.h.b16 %v156
    %v503 = vunpack.c.l.b16 %v157
    %v504 = vunpack.c.h.b16 %v157
    %v505 = vunpack.c.l.b16 %v158
    %v506 = vunpack.c.h.b16 %v158
    %v507 = vunpack.c.l.b16 %v159
    %v508 = vunpack.c.h.b16 %v159
    %v509 = vunpack.c.l.b16 %v160
    %v510 = vunpack.c.h.b16 %v160
    %v511 = vunpack.c.l.b16 %v161
    %v512 = vunpack.c.h.b16 %v161
    %v513 = vunpack.c.l.b16 %v162
    %v514 = vunpack.c.h.b16 %v162
    %v515 = vunpack.c.l.b16 %v163
    %v516 = vunpack.c.h.b16 %v163
    %v517 = vunpack.c.l.b16 %v164
    %v518 = vunpack.c.h.b16 %v164
    %v519 = vunpack.c.l.b16 %v165
    %v520 = vunpack.c.h.b16 %v165
    %v521 = vunpack.c.l.b16 %v166
    %v522 = vunpack.c.h.b16 %v166
    %v523 = vunpack.c.l.b16 %v167
    %v524 = vunpack.c.h.b16 %v167
    %v525 = vunpack.c.l.b16 %v168
    %v526 = vunpack.c.h.b16 %v168
    %v527 = vunpack.c.l.b16 %v169
    %v528 = vunpack.c.h.b16 %v169
    %v529 = vunpack.c.l.b16 %v170
    %v530 = vunpack.c.h.b16 %v170
    %v531 = vunpack.c.l.b16 %v171
    %v532 = vunpack.c.h.b16 %v171
    %v533 = vunpack.c.l.b16 %v172
    %v534 = vunpack.c.h.b16 %v172
    %v535 = vunpack.c.l.b16 %v173
    %v536 = vunpack.c.h.b16 %v173
    %v537 = vunpack.c.l.b16 %v174
    %v538 = vunpack.c.h.b16 %v174
    %v539 = vunpack.c.l.b16 %v175
    %v540 = vunpack.c.h.b16 %v175
    %v541 = vunpack.c.l.b16 %v176
    %v542 = vunpack.c.h.b16 %v176
    %v543 = vunpack.c.l.b16 %v177
    %v544 = vunpack.c.h.b16 %v177
    %v545 = vunpack.c.l.b16 %v178
    %v546 = vunpack.c.h.b16 %v178
    %v547 = vunpack.c.l.b16 %v179
    %v548 = vunpack.c.h.b16 %v179
    %v549 = vunpack.c.l.b16 %v180
    %v550 = vunpack.c.h.b16 %v180
    %v551 = vunpack.c.l.b16 %v181
    %v552 = vunpack.c.h.b16 %v181
    %v553 = vunpack.c.l.b16 %v182
    %v554 = vunpack.c.h.b16 %v182
    %v555 = vunpack.c.l.b16 %v183
    %v556 = vunpack.c.h.b16 %v183
    %v557 = vunpack.c.l.b16 %v184
    %v558 = vunpack.c.h.b16 %v184
    %v559 = vunpack.c.l.b16 %v185
    %v560 = vunpack.c.h.b16 %v185
    %v561 = vunpack.c.l.b16 %v186
    %v562 = vunpack.c.h.b16 %v186
    %v563 = vunpack.c.l.b16 %v187
    %v564 = vunpack.c.h.b16 %v187
    %v565 = vunpack.c.l.b16 %v188
    %v566 = vunpack.c.h.b16 %v188
    %v567 = vunpack.c.l.b16 %v189
    %v568 = vunpack.c.h.b16 %v189
    %v569 = vunpack.c.l.b16 %v190
    %v570 = vunpack.c.h.b16 %v190
    %v571 = vunpack.c.l.b16 %v191
    %v572 = vunpack.c.h.b16 %v191
    %v573 = vunpack.c.l.b16 %v192
    %v574 = vunpack.c.h.b16 %v192
    %v575 = vunpack.c.l.b16 %v193
    %v576 = vunpack.c.h.b16 %v193
    %v577 = vunpack.c.l.b16 %v194
    %v578 = vunpack.c.h.b16 %v194
    %v579 = vunpack.c.l.b16 %v195
    %v580 = vunpack.c.h.b16 %v195
    %v581 = vunpack.c.l.b16 %v196
    %v582 = vunpack.c.h.b16 %v196
    %v583 = vunpack.c.l.b16 %v197
    %v584 = vunpack.c.h.b16 %v197
    %v585 = vunpack.c.l.b16 %v198
    %v586 = vunpack.c.h.b16 %v198
    %v587 = vunpack.c.l.b16 %v199
    %v588 = vunpack.c.h.b16 %v199
    %v589 = vunpack.c.l.b16 %v200
    %v590 = vunpack.c.h.b16 %v200
    %v591 = vunpack.c.l.b16 %v201
    %v592 = vunpack.c.h.b16 %v201
    %v593 = vunpack.c.l.b16 %v202
    %v594 = vunpack.c.h.b16 %v202
    %v595 = vunpack.c.l.b16 %v203
    %v596 = vunpack.c.h.b16 %v203
    %v597 = vunpack.c.l.b16 %v204
    %v598 = vunpack.c.h.b16 %v204
    %v599 = vunpack.c.l.b16 %v205
    %v600 = vunpack.c.h.b16 %v205
    %v601 = vunpack.c.l.b16 %v206
    %v602 = vunpack.c.h.b16 %v206
    %v603 = vpack.c.b16 %v349, %v347
    %v604 = vpack.c.b16 %v350, %v348
    %v605 = vpack.c.b16 %v353, %v351
    %v606 = vpack.c.b16 %v354, %v352
    %v607 = vpack.c.b16 %v357, %v355
    %v608 = vpack.c.b16 %v358, %v356
    %v609 = vpack.c.b16 %v361, %v359
    %v610 = vpack.c.b16 %v362, %v360
    %v611 = vpack.c.b16 %v365, %v363
    %v612 = vpack.c.b16 %v366, %v364
    %v613 = vpack.c.b16 %v369, %v367
    %v614 = vpack.c.b16 %v370, %v368
    %v615 = vpack.c.b16 %v373, %v371
    %v616 = vpack.c.b16 %v374, %v372
    %v617 = vpack.c.b16 %v377, %v375
    %v618 = vpack.c.b16 %v378, %v376
    %v619 = vpack.c.b16 %v381, %v379
    %v620 = vpack.c.b16 %v382, %v380
    %v621 = vpack.c.b16 %v385, %v383
    %v622 = vpack.c.b16 %v386, %v384
    %v623 = vpack.c.b16 %v389, %v387
    %v624 = vpack.c.b16 %v390, %v388
    %v625 = vpack.c.b16 %v393, %v391
    %v626 = vpack.c.b16 %v394, %v392
    %v627 = vpack.c.b16 %v397, %v395
    %v628 = vpack.c.b16 %v398, %v396
    %v629 = vpack.c.b16 %v401, %v399
    %v630 = vpack.c.b16 %v402, %v400
    %v631 = vpack.c.b16 %v405, %v403
    %v632 = vpack.c.b16 %v406, %v404
    %v633 = vpack.c.b16 %v409, %v407
    %v634 = vpack.c.b16 %v410, %v408
    %v635 = vpack.c.b16 %v413, %v411
    %v636 = vpack.c.b16 %v414, %v412
    %v637 = vpack.c.b16 %v417, %v415
    %v638 = vpack.c.b16 %v418, %v416
    %v639 = vpack.c.b16 %v421, %v419
    %v640 = vpack.c.b16 %v422, %v420
    %v641 = vpack.c.b16 %v425, %v423
    %v642 = vpack.c.b16 %v426, %v424
    %v643 = vpack.c.b16 %v429, %v427
    %v644 = vpack.c.b16 %v430, %v428
    %v645 = vpack.c.b16 %v433, %v431
    %v646 = vpack.c.b16 %v434, %v432
    %v647 = vpack.c.b16 %v437, %v435
    %v648 = vpack.c.b16 %v438, %v436
    %v649 = vpack.c.b16 %v441, %v439
    %v650 = vpack.c.b16 %v442, %v440
    %v651 = vpack.c.b16 %v445, %v443
    %v652 = vpack.c.b16 %v446, %v444
    %v653 = vpack.c.b16 %v449, %v447
    %v654 = vpack.c.b16 %v450, %v448
    %v655 = vpack.c.b16 %v453, %v451
    %v656 = vpack.c.b16 %v454, %v452
    %v657 = vpack.c.b16 %v457, %v455
    %v658 = vpack.c.b16 %v458, %v456
    %v659 = vpack.c.b16 %v461, %v459
    %v660 = vpack.c.b16 %v462, %v460
    %v661 = vpack.c.b16 %v465, %v463
    %v662 = vpack.c.b16 %v466, %v464
    %v663 = vpack.c.b16 %v469, %v467
    %v664 = vpack.c.b16 %v470, %v468
    %v665 = vpack.c.b16 %v473, %v471
    %v666 = vpack.c.b16 %v474, %v472
    %v667 = vpack.c.b16 %v477, %v475
    %v668 = vpack.c.b16 %v478, %v476
    %v669 = vpack.c.b16 %v481, %v479
    %v670 = vpack.c.b16 %v482, %v480
    %v671 = vpack.c.b16 %v485, %v483
    %v672 = vpack.c.b16 %v486, %v484
    %v673 = vpack.c.b16 %v489, %v487
    %v674 = vpack.c.b16 %v490, %v488
    %v675 = vpack.c.b16 %v493, %v491
    %v676 = vpack.c.b16 %v494, %v492
    %v677 = vpack.c.b16 %v497, %v495
    %v678 = vpack.c.b16 %v498, %v496
    %v679 = vpack.c.b16 %v501, %v499
    %v680 = vpack.c.b16 %v502, %v500
    %v681 = vpack.c.b16 %v505, %v503
    %v682 = vpack.c.b16 %v506, %v504
    %v683 = vpack.c.b16 %v509, %v507
    %v684 = vpack.c.b16 %v510, %v508
    %v685 = vpack.c.b16 %v513, %v511
    %v686 = vpack.c.b16 %v514, %v512
    %v687 = vpack.c.b16 %v517, %v515
    %v688 = vpack.c.b16 %v518, %v516
    %v689 = vpack.c.b16 %v521, %v519
    %v690 = vpack.c.b16 %v522, %v520
    %v691 = vpack.c.b16 %v525, %v523
    %v692 = vpack.c.b16 %v526, %v524
    %v693 = vpack.c.b16 %v529, %v527
    %v694 = vpack.c.b16 %v530, %v528
    %v695 = vpack.c.b16 %v533, %v531
    %v696 = vpack.c.b16 %v534, %v532
    %v697 = vpack.c.b16 %v537, %v535
    %v698 = vpack.c.b16 %v538, %v536
    %v699 = vpack.c.b16 %v541, %v539
    %v700 = vpack.c.b16 %v542, %v540
    %v701 = vpack.c.b16 %v545, %v543
    %v702 = vpack.c.b16 %v546, %v544
    %v703 = vpack.c.b16 %v549, %v547
    %v704 = vpack.c.b16 %v550, %v548
    %v705 = vpack.c.b16 %v553, %v551
    %v706 = vpack.c.b16 %v554, %v552
    %v707 = vpack.c.b16 %v557, %v555
    %v708 = vpack.c.b16 %v558, %v556
    %v709 = vpack.c.b16 %v561, %v559
    %v710 = vpack.c.b16 %v562, %v560
    %v711 = vpack.c.b16 %v565, %v563
    %v712 = vpack.c.b16 %v566, %v564
    %v713 = vpack.c.b16 %v569, %v567
    %v714 = vpack.c.b16 %v570, %v568
    %v715 = vpack.c.b16 %v573, %v571
    %v716 = vpack.c.b16 %v574, %v572
    %v717 = vpack.c.b16 %v577, %v575
    %v718 = vpack.c.b16 %v578, %v576
    %v719 = vpack.c.b16 %v581, %v579
    %v720 = vpack.c.b16 %v582, %v580
    %v721 = vpack.c.b16 %v585, %v583
    %v722 = vpack.c.b16 %v586, %v584
    %v723 = vpack.c.b16 %v589, %v587
    %v724 = vpack.c.b16 %v590, %v588
    %v725 = vpack.c.b16 %v593, %v591
    %v726 = vpack.c.b16 %v594, %v592
    %v727 = vpack.c.b16 %v597, %v595
    %v728 = vpack.c.b16 %v598, %v596
    %v729 = vpack.c.b16 %v601, %v599
    %v730 = vpack.c.b16 %v602, %v600
    %859 = vmatprep.subr.bf16.mxu0 %v604
    %860 = vmatpush1.bf16.msra.mxu0 %v603
    %861 = vmatprep.subr.bf16.mxu0 %v606
    %862 = vmatpush1.bf16.msra.mxu0 %v605
    %863 = vmatprep.subr.bf16.mxu0 %v608
    %864 = vmatpush1.bf16.msra.mxu0 %v607
    %865 = vmatprep.subr.bf16.mxu0 %v610
    %866 = vmatpush1.bf16.msra.mxu0 %v609
    %867 = vmatprep.subr.bf16.mxu0 %v612
    %868 = vmatpush1.bf16.msra.mxu0 %v611
    %869 = vmatprep.subr.bf16.mxu0 %v614
    %870 = vmatpush1.bf16.msra.mxu0 %v613
    %871 = vmatprep.subr.bf16.mxu0 %v616
    %872 = vmatpush1.bf16.msra.mxu0 %v615
    %873 = vmatprep.subr.bf16.mxu0 %v618
    %874 = vmatpush1.bf16.msra.mxu0 %v617
    %875 = vmatprep.subr.bf16.mxu0 %v620
    %876 = vmatpush1.bf16.msra.mxu0 %v619
    %877 = vmatprep.subr.bf16.mxu0 %v622
    %878 = vmatpush1.bf16.msra.mxu0 %v621
    %879 = vmatprep.subr.bf16.mxu0 %v624
    %880 = vmatpush1.bf16.msra.mxu0 %v623
    %881 = vmatprep.subr.bf16.mxu0 %v626
    %882 = vmatpush1.bf16.msra.mxu0 %v625
    %883 = vmatprep.subr.bf16.mxu0 %v628
    %884 = vmatpush1.bf16.msra.mxu0 %v627
    %885 = vmatprep.subr.bf16.mxu0 %v630
    %886 = vmatpush1.bf16.msra.mxu0 %v629
    %887 = vmatprep.subr.bf16.mxu0 %v632
    %888 = vmatpush1.bf16.msra.mxu0 %v631
    %889 = vmatprep.subr.bf16.mxu0 %v634
    %890 = vmatpush1.bf16.msra.mxu0 %v633
    %891 = vmatprep.mubr.bf16.mxu0 %v72
    %892 = vmatmul.mubr.bf16.gmra.mrb[0].mxu0 %v71
    %v893 = vpop.f32.mrb[0].mxu0
    %v894 = vadd.f32 %v212, %v893
    %v895 = vpop.f32.mrb[0].mxu0
    %v896 = vadd.f32 %v216, %v895
    %v897 = vpop.f32.mrb[0].mxu0
    %v898 = vadd.f32 %v212, %v897
    %v899 = vpop.f32.mrb[0].mxu0
    %v900 = vadd.f32 %v216, %v899
    %901 = vdwg.mxu0
    %902 = vmatprep.subr.bf16.mxu0 %v636
    %903 = vmatpush1.bf16.msra.mxu0 %v635
    %904 = vmatprep.subr.bf16.mxu0 %v638
    %905 = vmatpush1.bf16.msra.mxu0 %v637
    %906 = vmatprep.subr.bf16.mxu0 %v640
    %907 = vmatpush1.bf16.msra.mxu0 %v639
    %908 = vmatprep.subr.bf16.mxu0 %v642
    %909 = vmatpush1.bf16.msra.mxu0 %v641
    %910 = vmatprep.subr.bf16.mxu0 %v644
    %911 = vmatpush1.bf16.msra.mxu0 %v643
    %912 = vmatprep.subr.bf16.mxu0 %v646
    %913 = vmatpush1.bf16.msra.mxu0 %v645
    %914 = vmatprep.subr.bf16.mxu0 %v648
    %915 = vmatpush1.bf16.msra.mxu0 %v647
    %916 = vmatprep.subr.bf16.mxu0 %v650
    %917 = vmatpush1.bf16.msra.mxu0 %v649
    %918 = vmatprep.subr.bf16.mxu0 %v652
    %919 = vmatpush1.bf16.msra.mxu0 %v651
    %920 = vmatprep.subr.bf16.mxu0 %v654
    %921 = vmatpush1.bf16.msra.mxu0 %v653
    %922 = vmatprep.subr.bf16.mxu0 %v656
    %923 = vmatpush1.bf16.msra.mxu0 %v655
    %924 = vmatprep.subr.bf16.mxu0 %v658
    %925 = vmatpush1.bf16.msra.mxu0 %v657
    %926 = vmatprep.subr.bf16.mxu0 %v660
    %927 = vmatpush1.bf16.msra.mxu0 %v659
    %928 = vmatprep.subr.bf16.mxu0 %v662
    %929 = vmatpush1.bf16.msra.mxu0 %v661
    %930 = vmatprep.subr.bf16.mxu0 %v664
    %931 = vmatpush1.bf16.msra.mxu0 %v663
    %932 = vmatprep.subr.bf16.mxu0 %v666
    %933 = vmatpush1.bf16.msra.mxu0 %v665
    %934 = vmatprep.mubr.bf16.mxu0 %v74
    %935 = vmatmul.mubr.bf16.gmra.mrb[0].mxu0 %v73
    %v936 = vpop.f32.mrb[0].mxu0
    %v937 = vadd.f32 %v894, %v936
    %v938 = vpop.f32.mrb[0].mxu0
    %v939 = vadd.f32 %v896, %v938
    %v940 = vpop.f32.mrb[0].mxu0
    %v941 = vadd.f32 %v898, %v940
    %v942 = vpop.f32.mrb[0].mxu0
    %v943 = vadd.f32 %v900, %v942
    %944 = vdwg.mxu0
    %945 = vmatprep.subr.bf16.mxu0 %v668
    %946 = vmatpush1.bf16.msra.mxu0 %v667
    %947 = vmatprep.subr.bf16.mxu0 %v670
    %948 = vmatpush1.bf16.msra.mxu0 %v669
    %949 = vmatprep.subr.bf16.mxu0 %v672
    %950 = vmatpush1.bf16.msra.mxu0 %v671
    %951 = vmatprep.subr.bf16.mxu0 %v674
    %952 = vmatpush1.bf16.msra.mxu0 %v673
    %953 = vmatprep.subr.bf16.mxu0 %v676
    %954 = vmatpush1.bf16.msra.mxu0 %v675
    %955 = vmatprep.subr.bf16.mxu0 %v678
    %956 = vmatpush1.bf16.msra.mxu0 %v677
    %957 = vmatprep.subr.bf16.mxu0 %v680
    %958 = vmatpush1.bf16.msra.mxu0 %v679
    %959 = vmatprep.subr.bf16.mxu0 %v682
    %960 = vmatpush1.bf16.msra.mxu0 %v681
    %961 = vmatprep.subr.bf16.mxu0 %v684
    %962 = vmatpush1.bf16.msra.mxu0 %v683
    %963 = vmatprep.subr.bf16.mxu0 %v686
    %964 = vmatpush1.bf16.msra.mxu0 %v685
    %965 = vmatprep.subr.bf16.mxu0 %v688
    %966 = vmatpush1.bf16.msra.mxu0 %v687
    %967 = vmatprep.subr.bf16.mxu0 %v690
    %968 = vmatpush1.bf16.msra.mxu0 %v689
    %969 = vmatprep.subr.bf16.mxu0 %v692
    %970 = vmatpush1.bf16.msra.mxu0 %v691
    %971 = vmatprep.subr.bf16.mxu0 %v694
    %972 = vmatpush1.bf16.msra.mxu0 %v693
    %973 = vmatprep.subr.bf16.mxu0 %v696
    %974 = vmatpush1.bf16.msra.mxu0 %v695
    %975 = vmatprep.subr.bf16.mxu0 %v698
    %976 = vmatpush1.bf16.msra.mxu0 %v697
    %977 = vmatprep.mubr.bf16.mxu0 %v76
    %978 = vmatmul.mubr.bf16.gmra.mrb[0].mxu0 %v75
    %v979 = vpop.f32.mrb[0].mxu0
    %v980 = vadd.f32 %v937, %v979
    %v981 = vpop.f32.mrb[0].mxu0
    %v982 = vadd.f32 %v939, %v981
    %v983 = vpop.f32.mrb[0].mxu0
    %v984 = vadd.f32 %v941, %v983
    %v985 = vpop.f32.mrb[0].mxu0
    %v986 = vadd.f32 %v943, %v985
    %987 = vdwg.mxu0
    %988 = vmatprep.subr.bf16.mxu0 %v700
    %989 = vmatpush1.bf16.msra.mxu0 %v699
    %990 = vmatprep.subr.bf16.mxu0 %v702
    %991 = vmatpush1.bf16.msra.mxu0 %v701
    %992 = vmatprep.subr.bf16.mxu0 %v704
    %993 = vmatpush1.bf16.msra.mxu0 %v703
    %994 = vmatprep.subr.bf16.mxu0 %v706
    %995 = vmatpush1.bf16.msra.mxu0 %v705
    %996 = vmatprep.subr.bf16.mxu0 %v708
    %997 = vmatpush1.bf16.msra.mxu0 %v707
    %998 = vmatprep.subr.bf16.mxu0 %v710
    %999 = vmatpush1.bf16.msra.mxu0 %v709
    %1000 = vmatprep.subr.bf16.mxu0 %v712
    %1001 = vmatpush1.bf16.msra.mxu0 %v711
    %1002 = vmatprep.subr.bf16.mxu0 %v714
    %1003 = vmatpush1.bf16.msra.mxu0 %v713
    %1004 = vmatprep.subr.bf16.mxu0 %v716
    %1005 = vmatpush1.bf16.msra.mxu0 %v715
    %1006 = vmatprep.subr.bf16.mxu0 %v718
    %1007 = vmatpush1.bf16.msra.mxu0 %v717
    %1008 = vmatprep.subr.bf16.mxu0 %v720
    %1009 = vmatpush1.bf16.msra.mxu0 %v719
    %1010 = vmatprep.subr.bf16.mxu0 %v722
    %1011 = vmatpush1.bf16.msra.mxu0 %v721
    %1012 = vmatprep.subr.bf16.mxu0 %v724
    %1013 = vmatpush1.bf16.msra.mxu0 %v723
    %1014 = vmatprep.subr.bf16.mxu0 %v726
    %1015 = vmatpush1.bf16.msra.mxu0 %v725
    %1016 = vmatprep.subr.bf16.mxu0 %v728
    %1017 = vmatpush1.bf16.msra.mxu0 %v727
    %1018 = vmatprep.subr.bf16.mxu0 %v730
    %1019 = vmatpush1.bf16.msra.mxu0 %v729
    %1020 = vmatprep.mubr.bf16.mxu0 %v78
    %1021 = vmatmul.mubr.bf16.gmra.mrb[0].mxu0 %v77
    %v1022 = vpop.f32.mrb[0].mxu0
    %v1023 = vadd.f32 %v980, %v1022
    %v1024 = vpop.f32.mrb[0].mxu0
    %v1025 = vadd.f32 %v982, %v1024
    %v1026 = vpop.f32.mrb[0].mxu0
    %v1027 = vadd.f32 %v984, %v1026
    %v1028 = vpop.f32.mrb[0].mxu0
    %v1029 = vadd.f32 %v986, %v1028
    %1030 = vdwg.mxu0
    %v1031 = vtanh.pop %v1023
    %v1032 = vtanh.pop %v1025
    %v1033 = vtanh.pop %v1027
    %v1034 = vtanh.pop %v1029
    %v1035 = vpack.c.bf16 %v1033, %v1031
    %v1036 = vpack.c.bf16 %v1034, %v1032
    %v1037 = vld [vmem:[%s3] sm:$0xff]
    %v1038 = vld [vmem:[%s3 + $0x8] sm:$0xff]
    %v1039 = vld [vmem:[%s3 + $0x10] sm:$0xff]
    %v1040 = vld [vmem:[%s3 + $0x18] sm:$0xff]
    %v1041 = vld [vmem:[%s3 + $0x20] sm:$0xff]
    %v1042 = vld [vmem:[%s3 + $0x28] sm:$0xff]
    %v1043 = vld [vmem:[%s3 + $0x30] sm:$0xff]
    %v1044 = vld [vmem:[%s3 + $0x38] sm:$0xff]
    %v1045 = vld [vmem:[%s3 + $0x40] sm:$0xff]
    %v1046 = vld [vmem:[%s3 + $0x48] sm:$0xff]
    %v1047 = vld [vmem:[%s3 + $0x50] sm:$0xff]
    %v1048 = vld [vmem:[%s3 + $0x58] sm:$0xff]
    %v1049 = vld [vmem:[%s3 + $0x60] sm:$0xff]
    %v1050 = vld [vmem:[%s3 + $0x68] sm:$0xff]
    %v1051 = vld [vmem:[%s3 + $0x70] sm:$0xff]
    %v1052 = vld [vmem:[%s3 + $0x78] sm:$0xff]
    %v1053 = vld [vmem:[%s3 + $0x80] sm:$0xff]
    %v1054 = vld [vmem:[%s3 + $0x88] sm:$0xff]
    %v1055 = vld [vmem:[%s3 + $0x90] sm:$0xff]
    %v1056 = vld [vmem:[%s3 + $0x98] sm:$0xff]
    %v1057 = vld [vmem:[%s3 + $0xa0] sm:$0xff]
    %v1058 = vld [vmem:[%s3 + $0xa8] sm:$0xff]
    %v1059 = vld [vmem:[%s3 + $0xb0] sm:$0xff]
    %v1060 = vld [vmem:[%s3 + $0xb8] sm:$0xff]
    %v1061 = vld [vmem:[%s3 + $0xc0] sm:$0xff]
    %v1062 = vld [vmem:[%s3 + $0xc8] sm:$0xff]
    %v1063 = vld [vmem:[%s3 + $0xd0] sm:$0xff]
    %v1064 = vld [vmem:[%s3 + $0xd8] sm:$0xff]
    %v1065 = vld [vmem:[%s3 + $0xe0] sm:$0xff]
    %v1066 = vld [vmem:[%s3 + $0xe8] sm:$0xff]
    %v1067 = vld [vmem:[%s3 + $0xf0] sm:$0xff]
    %v1068 = vld [vmem:[%s3 + $0xf8] sm:$0xff]
    %v1069 = vld [vmem:[%s4] sm:$0x3]
    %v1071 = vlaneseq
    %v1072 = vshrl.u32 %v1071, 7
    %v1073 = vsub.s32 0, %v1072
    %v1074 = vrot.slane %v1069, %v1073
    %v1075 = vlaneseq
    %v1076 = vshrl.u32 %v1075, 7
    %v1077 = vsub.s32 1, %v1076
    %v1078 = vrot.slane %v1069, %v1077
    %v1113 = vunpack.c.l.b16 %v1037
    %v1114 = vunpack.c.h.b16 %v1037
    %v1115 = vunpack.c.l.b16 %v1038
    %v1116 = vunpack.c.h.b16 %v1038
    %v1117 = vunpack.c.l.b16 %v1039
    %v1118 = vunpack.c.h.b16 %v1039
    %v1119 = vunpack.c.l.b16 %v1040
    %v1120 = vunpack.c.h.b16 %v1040
    %v1121 = vunpack.c.l.b16 %v1041
    %v1122 = vunpack.c.h.b16 %v1041
    %v1123 = vunpack.c.l.b16 %v1042
    %v1124 = vunpack.c.h.b16 %v1042
    %v1125 = vunpack.c.l.b16 %v1043
    %v1126 = vunpack.c.h.b16 %v1043
    %v1127 = vunpack.c.l.b16 %v1044
    %v1128 = vunpack.c.h.b16 %v1044
    %v1129 = vunpack.c.l.b16 %v1045
    %v1130 = vunpack.c.h.b16 %v1045
    %v1131 = vunpack.c.l.b16 %v1046
    %v1132 = vunpack.c.h.b16 %v1046
    %v1133 = vunpack.c.l.b16 %v1047
    %v1134 = vunpack.c.h.b16 %v1047
    %v1135 = vunpack.c.l.b16 %v1048
    %v1136 = vunpack.c.h.b16 %v1048
    %v1137 = vunpack.c.l.b16 %v1049
    %v1138 = vunpack.c.h.b16 %v1049
    %v1139 = vunpack.c.l.b16 %v1050
    %v1140 = vunpack.c.h.b16 %v1050
    %v1141 = vunpack.c.l.b16 %v1051
    %v1142 = vunpack.c.h.b16 %v1051
    %v1143 = vunpack.c.l.b16 %v1052
    %v1144 = vunpack.c.h.b16 %v1052
    %v1145 = vunpack.c.l.b16 %v1053
    %v1146 = vunpack.c.h.b16 %v1053
    %v1147 = vunpack.c.l.b16 %v1054
    %v1148 = vunpack.c.h.b16 %v1054
    %v1149 = vunpack.c.l.b16 %v1055
    %v1150 = vunpack.c.h.b16 %v1055
    %v1151 = vunpack.c.l.b16 %v1056
    %v1152 = vunpack.c.h.b16 %v1056
    %v1153 = vunpack.c.l.b16 %v1057
    %v1154 = vunpack.c.h.b16 %v1057
    %v1155 = vunpack.c.l.b16 %v1058
    %v1156 = vunpack.c.h.b16 %v1058
    %v1157 = vunpack.c.l.b16 %v1059
    %v1158 = vunpack.c.h.b16 %v1059
    %v1159 = vunpack.c.l.b16 %v1060
    %v1160 = vunpack.c.h.b16 %v1060
    %v1161 = vunpack.c.l.b16 %v1061
    %v1162 = vunpack.c.h.b16 %v1061
    %v1163 = vunpack.c.l.b16 %v1062
    %v1164 = vunpack.c.h.b16 %v1062
    %v1165 = vunpack.c.l.b16 %v1063
    %v1166 = vunpack.c.h.b16 %v1063
    %v1167 = vunpack.c.l.b16 %v1064
    %v1168 = vunpack.c.h.b16 %v1064
    %v1169 = vunpack.c.l.b16 %v1065
    %v1170 = vunpack.c.h.b16 %v1065
    %v1171 = vunpack.c.l.b16 %v1066
    %v1172 = vunpack.c.h.b16 %v1066
    %v1173 = vunpack.c.l.b16 %v1067
    %v1174 = vunpack.c.h.b16 %v1067
    %v1175 = vunpack.c.l.b16 %v1068
    %v1176 = vunpack.c.h.b16 %v1068
    %v1177 = vpack.c.b16 %v1115, %v1113
    %v1178 = vpack.c.b16 %v1116, %v1114
    %v1179 = vpack.c.b16 %v1119, %v1117
    %v1180 = vpack.c.b16 %v1120, %v1118
    %v1181 = vpack.c.b16 %v1123, %v1121
    %v1182 = vpack.c.b16 %v1124, %v1122
    %v1183 = vpack.c.b16 %v1127, %v1125
    %v1184 = vpack.c.b16 %v1128, %v1126
    %v1185 = vpack.c.b16 %v1131, %v1129
    %v1186 = vpack.c.b16 %v1132, %v1130
    %v1187 = vpack.c.b16 %v1135, %v1133
    %v1188 = vpack.c.b16 %v1136, %v1134
    %v1189 = vpack.c.b16 %v1139, %v1137
    %v1190 = vpack.c.b16 %v1140, %v1138
    %v1191 = vpack.c.b16 %v1143, %v1141
    %v1192 = vpack.c.b16 %v1144, %v1142
    %v1193 = vpack.c.b16 %v1147, %v1145
    %v1194 = vpack.c.b16 %v1148, %v1146
    %v1195 = vpack.c.b16 %v1151, %v1149
    %v1196 = vpack.c.b16 %v1152, %v1150
    %v1197 = vpack.c.b16 %v1155, %v1153
    %v1198 = vpack.c.b16 %v1156, %v1154
    %v1199 = vpack.c.b16 %v1159, %v1157
    %v1200 = vpack.c.b16 %v1160, %v1158
    %v1201 = vpack.c.b16 %v1163, %v1161
    %v1202 = vpack.c.b16 %v1164, %v1162
    %v1203 = vpack.c.b16 %v1167, %v1165
    %v1204 = vpack.c.b16 %v1168, %v1166
    %v1205 = vpack.c.b16 %v1171, %v1169
    %v1206 = vpack.c.b16 %v1172, %v1170
    %v1207 = vpack.c.b16 %v1175, %v1173
    %v1208 = vpack.c.b16 %v1176, %v1174
    %1241 = vmatprep.subr.bf16.mxu0 %v1178
    %1242 = vmatpush1.bf16.msra.mxu0 %v1177
    %1243 = vmatprep.subr.bf16.mxu0 %v1180
    %1244 = vmatpush1.bf16.msra.mxu0 %v1179
    %1245 = vmatprep.subr.bf16.mxu0 %v1182
    %1246 = vmatpush1.bf16.msra.mxu0 %v1181
    %1247 = vmatprep.subr.bf16.mxu0 %v1184
    %1248 = vmatpush1.bf16.msra.mxu0 %v1183
    %1249 = vmatprep.subr.bf16.mxu0 %v1186
    %1250 = vmatpush1.bf16.msra.mxu0 %v1185
    %1251 = vmatprep.subr.bf16.mxu0 %v1188
    %1252 = vmatpush1.bf16.msra.mxu0 %v1187
    %1253 = vmatprep.subr.bf16.mxu0 %v1190
    %1254 = vmatpush1.bf16.msra.mxu0 %v1189
    %1255 = vmatprep.subr.bf16.mxu0 %v1192
    %1256 = vmatpush1.bf16.msra.mxu0 %v1191
    %1257 = vmatprep.subr.bf16.mxu0 %v1194
    %1258 = vmatpush1.bf16.msra.mxu0 %v1193
    %1259 = vmatprep.subr.bf16.mxu0 %v1196
    %1260 = vmatpush1.bf16.msra.mxu0 %v1195
    %1261 = vmatprep.subr.bf16.mxu0 %v1198
    %1262 = vmatpush1.bf16.msra.mxu0 %v1197
    %1263 = vmatprep.subr.bf16.mxu0 %v1200
    %1264 = vmatpush1.bf16.msra.mxu0 %v1199
    %1265 = vmatprep.subr.bf16.mxu0 %v1202
    %1266 = vmatpush1.bf16.msra.mxu0 %v1201
    %1267 = vmatprep.subr.bf16.mxu0 %v1204
    %1268 = vmatpush1.bf16.msra.mxu0 %v1203
    %1269 = vmatprep.subr.bf16.mxu0 %v1206
    %1270 = vmatpush1.bf16.msra.mxu0 %v1205
    %1271 = vmatprep.subr.bf16.mxu0 %v1208
    %1272 = vmatpush1.bf16.msra.mxu0 %v1207
    %1273 = vmatprep.mubr.bf16.mxu0 %v1036
    %1274 = vmatmul.mubr.bf16.gmra.mrb[0].mxu0 %v1035
    %v1275 = vpop.f32.mrb[0].mxu0
    %v1276 = vadd.f32 %v1074, %v1275
    %v1277 = vpop.f32.mrb[0].mxu0
    %v1278 = vadd.f32 %v1078, %v1277
    %v1279 = vpop.f32.mrb[0].mxu0
    %v1280 = vadd.f32 %v1074, %v1279
    %v1281 = vpop.f32.mrb[0].mxu0
    %v1282 = vadd.f32 %v1078, %v1281
    %1283 = vdwg.mxu0
    %v1284 = vtanh.pop %v1276
    %v1285 = vtanh.pop %v1278
    %v1286 = vtanh.pop %v1280
    %v1287 = vtanh.pop %v1282
    %v1288 = vpack.c.bf16 %v1286, %v1284
    %v1289 = vpack.c.bf16 %v1287, %v1285
    %v1290 = vld [vmem:[#allocation4] sm:$0xf]
    %v1291 = vld [vmem:[#allocation4 + $0x4] sm:$0xf]
    %v1292 = vld [vmem:[#allocation4 + $0x8] sm:$0xf]
    %v1293 = vld [vmem:[#allocation4 + $0xc] sm:$0xf]
    %v1294 = vld [vmem:[#allocation4 + $0x10] sm:$0xf]
    %v1295 = vld [vmem:[#allocation4 + $0x14] sm:$0xf]
    %v1296 = vld [vmem:[#allocation4 + $0x18] sm:$0xf]
    %v1297 = vld [vmem:[#allocation4 + $0x1c] sm:$0xf]
    %v1298 = vld [vmem:[#allocation4 + $0x20] sm:$0xf]
    %v1299 = vld [vmem:[#allocation4 + $0x24] sm:$0xf]
    %v1300 = vld [vmem:[#allocation4 + $0x28] sm:$0xf]
    %v1301 = vld [vmem:[#allocation4 + $0x2c] sm:$0xf]
    %v1302 = vld [vmem:[#allocation4 + $0x30] sm:$0xf]
    %v1303 = vld [vmem:[#allocation4 + $0x34] sm:$0xf]
    %v1304 = vld [vmem:[#allocation4 + $0x38] sm:$0xf]
    %v1305 = vld [vmem:[#allocation4 + $0x3c] sm:$0xf]
    %v1306 = vld [vmem:[#allocation4 + $0x40] sm:$0xf]
    %v1307 = vld [vmem:[#allocation4 + $0x44] sm:$0xf]
    %v1308 = vld [vmem:[#allocation4 + $0x48] sm:$0xf]
    %v1309 = vld [vmem:[#allocation4 + $0x4c] sm:$0xf]
    %v1310 = vld [vmem:[#allocation4 + $0x50] sm:$0xf]
    %v1311 = vld [vmem:[#allocation4 + $0x54] sm:$0xf]
    %v1312 = vld [vmem:[#allocation4 + $0x58] sm:$0xf]
    %v1313 = vld [vmem:[#allocation4 + $0x5c] sm:$0xf]
    %v1314 = vld [vmem:[#allocation4 + $0x60] sm:$0xf]
    %v1315 = vld [vmem:[#allocation4 + $0x64] sm:$0xf]
    %v1316 = vld [vmem:[#allocation4 + $0x68] sm:$0xf]
    %v1317 = vld [vmem:[#allocation4 + $0x6c] sm:$0xf]
    %v1318 = vld [vmem:[#allocation4 + $0x70] sm:$0xf]
    %v1319 = vld [vmem:[#allocation4 + $0x74] sm:$0xf]
    %v1320 = vld [vmem:[#allocation4 + $0x78] sm:$0xf]
    %v1321 = vld [vmem:[#allocation4 + $0x7c] sm:$0xf]
    %v1322 = vld [vmem:[%s6] sm:$0x1]
    %v1324 = vlaneseq
    %v1325 = vshrl.u32 %v1324, 7
    %v1326 = vsub.s32 0, %v1325
    %v1327 = vrot.slane %v1322, %v1326
    %v1361 = vunpack.c.l.b16 %v1290
    %v1362 = vunpack.c.l.b16 %v1291
    %v1363 = vunpack.c.l.b16 %v1292
    %v1364 = vunpack.c.l.b16 %v1293
    %v1365 = vunpack.c.l.b16 %v1294
    %v1366 = vunpack.c.l.b16 %v1295
    %v1367 = vunpack.c.l.b16 %v1296
    %v1368 = vunpack.c.l.b16 %v1297
    %v1369 = vunpack.c.l.b16 %v1298
    %v1370 = vunpack.c.l.b16 %v1299
    %v1371 = vunpack.c.l.b16 %v1300
    %v1372 = vunpack.c.l.b16 %v1301
    %v1373 = vunpack.c.l.b16 %v1302
    %v1374 = vunpack.c.l.b16 %v1303
    %v1375 = vunpack.c.l.b16 %v1304
    %v1376 = vunpack.c.l.b16 %v1305
    %v1377 = vunpack.c.l.b16 %v1306
    %v1378 = vunpack.c.l.b16 %v1307
    %v1379 = vunpack.c.l.b16 %v1308
    %v1380 = vunpack.c.l.b16 %v1309
    %v1381 = vunpack.c.l.b16 %v1310
    %v1382 = vunpack.c.l.b16 %v1311
    %v1383 = vunpack.c.l.b16 %v1312
    %v1384 = vunpack.c.l.b16 %v1313
    %v1385 = vunpack.c.l.b16 %v1314
    %v1386 = vunpack.c.l.b16 %v1315
    %v1387 = vunpack.c.l.b16 %v1316
    %v1388 = vunpack.c.l.b16 %v1317
    %v1389 = vunpack.c.l.b16 %v1318
    %v1390 = vunpack.c.l.b16 %v1319
    %v1391 = vunpack.c.l.b16 %v1320
    %v1392 = vunpack.c.l.b16 %v1321
    %v1393 = vpack.c.b16 %v1362, %v1361
    %v1394 = vpack.c.b16 %v1364, %v1363
    %v1395 = vpack.c.b16 %v1366, %v1365
    %v1396 = vpack.c.b16 %v1368, %v1367
    %v1397 = vpack.c.b16 %v1370, %v1369
    %v1398 = vpack.c.b16 %v1372, %v1371
    %v1399 = vpack.c.b16 %v1374, %v1373
    %v1400 = vpack.c.b16 %v1376, %v1375
    %v1401 = vpack.c.b16 %v1378, %v1377
    %v1402 = vpack.c.b16 %v1380, %v1379
    %v1403 = vpack.c.b16 %v1382, %v1381
    %v1404 = vpack.c.b16 %v1384, %v1383
    %v1405 = vpack.c.b16 %v1386, %v1385
    %v1406 = vpack.c.b16 %v1388, %v1387
    %v1407 = vpack.c.b16 %v1390, %v1389
    %v1408 = vpack.c.b16 %v1392, %v1391
    %1425 = vmatprep.subr.bf16.mxu0 0
    %1426 = vmatpush1.bf16.msra.mxu0 %v1393
    %1427 = vmatprep.subr.bf16.mxu0 0
    %1428 = vmatpush1.bf16.msra.mxu0 %v1394
    %1429 = vmatprep.subr.bf16.mxu0 0
    %1430 = vmatpush1.bf16.msra.mxu0 %v1395
    %1431 = vmatprep.subr.bf16.mxu0 0
    %1432 = vmatpush1.bf16.msra.mxu0 %v1396
    %1433 = vmatprep.subr.bf16.mxu0 0
    %1434 = vmatpush1.bf16.msra.mxu0 %v1397
    %1435 = vmatprep.subr.bf16.mxu0 0
    %1436 = vmatpush1.bf16.msra.mxu0 %v1398
    %1437 = vmatprep.subr.bf16.mxu0 0
    %1438 = vmatpush1.bf16.msra.mxu0 %v1399
    %1439 = vmatprep.subr.bf16.mxu0 0
    %1440 = vmatpush1.bf16.msra.mxu0 %v1400
    %1441 = vmatprep.subr.bf16.mxu0 0
    %1442 = vmatpush1.bf16.msra.mxu0 %v1401
    %1443 = vmatprep.subr.bf16.mxu0 0
    %1444 = vmatpush1.bf16.msra.mxu0 %v1402
    %1445 = vmatprep.subr.bf16.mxu0 0
    %1446 = vmatpush1.bf16.msra.mxu0 %v1403
    %1447 = vmatprep.subr.bf16.mxu0 0
    %1448 = vmatpush1.bf16.msra.mxu0 %v1404
    %1449 = vmatprep.subr.bf16.mxu0 0
    %1450 = vmatpush1.bf16.msra.mxu0 %v1405
    %1451 = vmatprep.subr.bf16.mxu0 0
    %1452 = vmatpush1.bf16.msra.mxu0 %v1406
    %1453 = vmatprep.subr.bf16.mxu0 0
    %1454 = vmatpush1.bf16.msra.mxu0 %v1407
    %1455 = vmatprep.subr.bf16.mxu0 0
    %1456 = vmatpush1.bf16.msra.mxu0 %v1408
    %1457 = vmatprep.mubr.bf16.mxu0 %v1289
    %1458 = vmatmul.mubr.bf16.gmra.mrb[0].mxu0 %v1288
    %v1459 = vpop.f32.mrb[0].mxu0
    %v1460 = vadd.f32 %v1327, %v1459
    %v1461 = vpop.f32.mrb[0].mxu0
    %v1462 = vpop.f32.mrb[0].mxu0
    %v1463 = vadd.f32 %v1327, %v1462
    %v1464 = vpop.f32.mrb[0].mxu0
    %1465 = vdwg.mxu0
    %1466 = vst [vmem:[%s7] sm:$0xff] %v1460
    %1467 = vst [vmem:[%s7 + $0x8] sm:$0xff] %v1463
    // Predicated region
    $region38: #{complex_input_network_forward.1} parent=1 // pred_check
      _
    $region39: #{complex_input_network_forward.1} parent=1 // pred_check_branch
      %1469 = sbr.rel (0) target = $region41
    $region40: #{complex_input_network_forward.1} parent=1 // pred_region
      _
    $region41: #{complex_input_network_forward.1} parent=1 // pred_fallthru
      _
    // Predicated region
    $region42: #{complex_input_network_forward.1} parent=1 // pred_check
      _
    $region43: #{complex_input_network_forward.1} parent=1 // pred_check_branch
      %1471 = sbr.rel (0) target = $region45
    $region44: #{complex_input_network_forward.1} parent=1 // pred_region
      _
    $region45: #{complex_input_network_forward.1} parent=1 // pred_fallthru
      _
    %1472 = vsyncpa [#allocation3], 1
    %1473 = vsyncpa [#allocation5], 1

</llo_original>
